<compile_context>
chip_gen: v5e
topology: v5e:2x2
jax: 0.10.0
libtpu: 0.0.40
codegen_flags: <defaults>
</compile_context>

<pallas_src>
import functools
import math

import jax
import jax.numpy as jnp
from jax import lax
from jax.experimental import pallas as pl
from jax.experimental.pallas import tpu as pltpu

_LANE = 128
_SUBLANE = 8


def _round_up(x: int, m: int) -> int:
    return ((x + m - 1) // m) * m


def mlp_softmax_kernel(x_ref, w1_ref, b1_ref, w2_ref, b2_ref, o_ref, *, out_valid):
    # Hidden layer: Linear + ReLU (bf16 MXU operands, f32 accumulation).
    x = x_ref[...]
    h = jnp.dot(x, w1_ref[...], preferred_element_type=jnp.float32) + b1_ref[...]
    h = jnp.maximum(h, 0.0)

    # Output layer: Linear + ReLU.
    z = jnp.dot(h.astype(w2_ref.dtype), w2_ref[...],
                preferred_element_type=jnp.float32) + b2_ref[...]
    z = jnp.maximum(z, 0.0)

    # Mask padded logit lanes to -inf so they contribute nothing to the softmax.
    col = lax.broadcasted_iota(jnp.int32, z.shape, 1)
    z = jnp.where(col < out_valid, z, -jnp.inf)

    # Numerically stable softmax over features. Exact divide: rows sum to 1 to
    # f32 rounding (the approx reciprocal only guaranteed ~1e-3), and the
    # divide is free in this memory-bound kernel.
    m = jnp.max(z, axis=1, keepdims=True)
    e = jnp.exp(z - m)
    s = jnp.sum(e, axis=1, keepdims=True)
    p = e / s

    # Store only the true out_valid columns -> narrow, unpadded output in HBM.
    o_ref[...] = p[:, :out_valid].astype(o_ref.dtype)


def prepare_params(w1, b1, w2, b2, *, compute_dtype=jnp.bfloat16):
    """Pad feature dims to the 128-lane width and cast weights once.

    w1: (inNodes, hdNodes),  b1: (hdNodes,) or (1, hdNodes)
    w2: (hdNodes, outNodes), b2: (outNodes,) or (1, outNodes)
    """
    in_nodes, hd_nodes = w1.shape
    out_nodes = w2.shape[1]
    hd_p = _round_up(hd_nodes, _LANE)
    out_p = _round_up(out_nodes, _LANE)

    b1 = jnp.asarray(b1).reshape(1, hd_nodes)
    b2 = jnp.asarray(b2).reshape(1, out_nodes)

    # Zero-padded hidden columns give ReLU(0 + 0) = 0 and hit zero rows of W2,
    # so they contribute nothing; padded output columns are masked in-kernel.
    w1_p = jnp.pad(w1, ((0, 0), (0, hd_p - hd_nodes))).astype(compute_dtype)
    b1_p = jnp.pad(b1, ((0, 0), (0, hd_p - hd_nodes))).astype(jnp.float32)
    w2_p = jnp.pad(w2, ((0, hd_p - hd_nodes), (0, out_p - out_nodes))).astype(compute_dtype)
    b2_p = jnp.pad(b2, ((0, 0), (0, out_p - out_nodes))).astype(jnp.float32)

    return dict(w1=w1_p, b1=b1_p, w2=w2_p, b2=b2_p,
                in_nodes=in_nodes, hd_nodes=hd_nodes, out_nodes=out_nodes,
                compute_dtype=compute_dtype)


def _jax_forward(x2d, params):
    """Fused-XLA forward with the same numerics as the kernel (bf16 MXU, f32 acc)."""
    cd = params["compute_dtype"]
    out_nodes = params["out_nodes"]
    h = jnp.dot(x2d.astype(cd), params["w1"],
                preferred_element_type=jnp.float32) + params["b1"]
    h = jnp.maximum(h, 0.0)
    z = jnp.dot(h.astype(cd), params["w2"],
                preferred_element_type=jnp.float32) + params["b2"]
    z = jnp.maximum(z, 0.0)[:, :out_nodes]
    return jax.nn.softmax(z, axis=1)


def net_forward(x, params, *, block_batch=2048, small_batch_threshold=256):
    """Pallas equivalent of Net.forward.

    x: any shape; flattened to (-1, inNodes) like inM.view(-1, inNodes).
    params: output of prepare_params (padded/cast once, reusable across calls).
    """
    in_nodes = params["in_nodes"]
    out_nodes = params["out_nodes"]
    cd = params["compute_dtype"]
    hd_p = params["w1"].shape[1]
    out_p = params["w2"].shape[1]

    x2d = x.reshape(-1, in_nodes)            # glue: inM.view(-1, inNodes)
    batch = x2d.shape[0]

    # Tiny batches: a single XLA fusion beats the kernel's fixed overhead.
    if batch < small_batch_threshold:
        return _jax_forward(x2d, params)

    # Sublane alignment for the compute dtype (8 rows for f32, 16 for bf16).
    itemsize = jnp.dtype(cd).itemsize
    row_align = _SUBLANE * (4 // itemsize)

    # Batch tile: big enough to amortize per-step overhead and keep DMA bursts
    # long, capped near ceil(batch/2) so the grid has >= 2 parallel steps
    # (v7x megacore) whenever the batch allows it. When tb clamps to `batch`
    # the single block equals the full array dim, which is always legal.
    block_batch = max(row_align, (block_batch // row_align) * row_align)
    tb = min(block_batch, _round_up((batch + 1) // 2, row_align))
    tb = max(tb, row_align)
    tb = min(tb, batch)
    grid = ((batch + tb - 1) // tb,)

    x_c = x2d.astype(cd)

    bytes_accessed = (
        batch * in_nodes * itemsize            # x read
        + batch * out_nodes * 4                # narrow output write
        + params["w1"].size * itemsize + params["w2"].size * itemsize
        + params["b1"].size * 4 + params["b2"].size * 4
    )
    cost = pl.CostEstimate(
        flops=2 * batch * (in_nodes * hd_p + hd_p * out_p),
        transcendentals=batch * out_p,
        bytes_accessed=bytes_accessed,
    )

    return pl.pallas_call(
        functools.partial(mlp_softmax_kernel, out_valid=out_nodes),
        out_shape=jax.ShapeDtypeStruct((batch, out_nodes), jnp.float32),
        grid=grid,
        in_specs=[
            # x: one batch tile per grid step (double-buffered by Pallas).
            pl.BlockSpec((tb, in_nodes), lambda i: (i, 0)),
            # Weights & biases: constant index_map -> VMEM-resident across steps.
            pl.BlockSpec((in_nodes, hd_p), lambda i: (0, 0)),
            pl.BlockSpec((1, hd_p), lambda i: (0, 0)),
            pl.BlockSpec((hd_p, out_p), lambda i: (0, 0)),
            pl.BlockSpec((1, out_p), lambda i: (0, 0)),
        ],
        # Narrow (unpadded) output: last block dim equals the full array dim.
        out_specs=pl.BlockSpec((tb, out_nodes), lambda i: (i, 0)),
        compiler_params=pltpu.CompilerParams(
            dimension_semantics=("parallel",),   # independent batch tiles
        ),
        cost_estimate=cost,
    )(x_c, params["w1"], params["b1"], params["w2"], params["b2"])


if __name__ == "__main__":
    # Small shapes consistent with the module: inNodes=64, hdNodes=32, outNodes=16.
    in_nodes, hd_nodes, out_nodes = 64, 32, 16
    batch = 8

    key = jax.random.PRNGKey(0)
    kx, kx2, kw1, kb1, kw2, kb2 = jax.random.split(key, 6)

    # Input given as a 4-D tensor (like an image batch); forward flattens it.
    x = jax.random.normal(kx, (batch, 4, 4, 4), dtype=jnp.float32)  # 4*4*4 = 64 = inNodes

    # Deterministic parameter init (uniform, like torch.nn.Linear default bounds).
    bound1 = 1.0 / math.sqrt(in_nodes)
    bound2 = 1.0 / math.sqrt(hd_nodes)
    w1 = jax.random.uniform(kw1, (in_nodes, hd_nodes), jnp.float32, -bound1, bound1)
    b1 = jax.random.uniform(kb1, (1, hd_nodes), jnp.float32, -bound1, bound1)
    w2 = jax.random.uniform(kw2, (hd_nodes, out_nodes), jnp.float32, -bound2, bound2)
    b2 = jax.random.uniform(kb2, (1, out_nodes), jnp.float32, -bound2, bound2)

    params = prepare_params(w1, b1, w2, b2)

    # small_batch_threshold=0 forces the Pallas path even at this tiny batch so
    # the kernel itself is exercised.
    out = net_forward(x, params, small_batch_threshold=0)
    out = jax.block_until_ready(out)
    assert out.shape == (batch, out_nodes)

    x2d = x.reshape(-1, in_nodes)
    # Reference matching the kernel numerics (bf16 operands, f32 accumulation).
    ref_matched = _jax_forward(x2d, params)
    # Pure-f32 reference of the original module (looser tolerance: bf16 cast).
    h32 = jnp.maximum(x2d @ w1 + b1, 0.0)
    z32 = jnp.maximum(h32 @ w2 + b2, 0.0)
    ref_f32 = jax.nn.softmax(z32, axis=1)

    assert jnp.allclose(out, ref_matched, atol=1e-3, rtol=1e-3)
    assert jnp.allclose(out, ref_f32, atol=2e-2, rtol=2e-2)
    assert jnp.allclose(jnp.sum(out, axis=1), 1.0, atol=1e-4)

    # Second check: batch not a multiple of the tile -> exercises the ragged
    # last grid block (masked output stores).
    x_rag = jax.random.normal(kx2, (20, in_nodes), dtype=jnp.float32)
    out_rag = jax.block_until_ready(net_forward(x_rag, params, small_batch_threshold=0))
    ref_rag = _jax_forward(x_rag, params)
    assert out_rag.shape == (20, out_nodes)
    assert jnp.allclose(out_rag, ref_rag, atol=1e-3, rtol=1e-3)
    assert jnp.allclose(jnp.sum(out_rag, axis=1), 1.0, atol=1e-4)

    print("KERNEL_OK")
</pallas_src>

<mosaic_0001>
module attributes {stable_mosaic.version = 11 : i64} {
  func.func @mlp_softmax_kernel(%arg0: i32, %arg1: memref<8x64xbf16, #tpu.memory_space<vmem>>, %arg2: memref<64x128xbf16, #tpu.memory_space<vmem>>, %arg3: memref<1x128xf32, #tpu.memory_space<vmem>>, %arg4: memref<128x128xbf16, #tpu.memory_space<vmem>>, %arg5: memref<1x128xf32, #tpu.memory_space<vmem>>, %arg6: memref<8x16xf32, #tpu.memory_space<vmem>>) attributes {dimension_semantics = [#tpu.dimension_semantics<parallel>], iteration_bounds = array<i64: 1>, scalar_prefetch = 0 : i64, scratch_operands = 0 : i64, tpu.core_type = #tpu.core_type<tc>, window_params = [{transform_indices = @transform_0, window_bounds = array<i64: 8, 64>}, {pipeline_mode = #tpu.pipeline_mode<synchronous>, transform_indices = @transform_1, window_bounds = array<i64: 64, 128>}, {pipeline_mode = #tpu.pipeline_mode<synchronous>, transform_indices = @transform_2, window_bounds = array<i64: 1, 128>}, {pipeline_mode = #tpu.pipeline_mode<synchronous>, transform_indices = @transform_3, window_bounds = array<i64: 128, 128>}, {pipeline_mode = #tpu.pipeline_mode<synchronous>, transform_indices = @transform_4, window_bounds = array<i64: 1, 128>}, {transform_indices = @transform_5, window_bounds = array<i64: 8, 16>}]} {
    %c0 = arith.constant 0 : index
    %c0_0 = arith.constant 0 : index
    %0 = vector.load %arg1[%c0, %c0_0] : memref<8x64xbf16, #tpu.memory_space<vmem>>, vector<8x64xbf16>
    %c0_1 = arith.constant 0 : index
    %c0_2 = arith.constant 0 : index
    %1 = vector.load %arg2[%c0_1, %c0_2] : memref<64x128xbf16, #tpu.memory_space<vmem>>, vector<64x128xbf16>
    %cst = arith.constant dense<0.000000e+00> : vector<8x128xf32>
    %2 = tpu.matmul %0, %1, %cst {dimension_numbers = #tpu.dot_dimension_numbers<[1], [0], [0], [1], [0, 0, 1, 1], [], []>} : vector<8x64xbf16>, vector<64x128xbf16>, vector<8x128xf32> -> vector<8x128xf32>
    %c0_3 = arith.constant 0 : index
    %c0_4 = arith.constant 0 : index
    %3 = vector.load %arg3[%c0_3, %c0_4] : memref<1x128xf32, #tpu.memory_space<vmem>>, vector<1x128xf32>
    %4 = vector.broadcast %3 : vector<1x128xf32> to vector<8x128xf32>
    %5 = arith.addf %2, %4 : vector<8x128xf32>
    %cst_5 = arith.constant 0.000000e+00 : f32
    %6 = vector.broadcast %cst_5 : f32 to vector<8x128xf32>
    %7 = arith.maximumf %5, %6 : vector<8x128xf32>
    %8 = arith.truncf %7 : vector<8x128xf32> to vector<8x128xbf16>
    %c0_6 = arith.constant 0 : index
    %c0_7 = arith.constant 0 : index
    %9 = vector.load %arg4[%c0_6, %c0_7] : memref<128x128xbf16, #tpu.memory_space<vmem>>, vector<128x128xbf16>
    %cst_8 = arith.constant dense<0.000000e+00> : vector<8x128xf32>
    %10 = tpu.matmul %8, %9, %cst_8 {dimension_numbers = #tpu.dot_dimension_numbers<[1], [0], [0], [1], [0, 0, 1, 1], [], []>} : vector<8x128xbf16>, vector<128x128xbf16>, vector<8x128xf32> -> vector<8x128xf32>
    %c0_9 = arith.constant 0 : index
    %c0_10 = arith.constant 0 : index
    %11 = vector.load %arg5[%c0_9, %c0_10] : memref<1x128xf32, #tpu.memory_space<vmem>>, vector<1x128xf32>
    %12 = vector.broadcast %11 : vector<1x128xf32> to vector<8x128xf32>
    %13 = arith.addf %10, %12 : vector<8x128xf32>
    %cst_11 = arith.constant 0.000000e+00 : f32
    %14 = vector.broadcast %cst_11 : f32 to vector<8x128xf32>
    %15 = arith.maximumf %13, %14 : vector<8x128xf32>
    %16 = tpu.iota {dimensions = array<i32: 1>} : vector<8x128xi32>
    %c16_i32 = arith.constant 16 : i32
    %17 = vector.broadcast %c16_i32 : i32 to vector<8x128xi32>
    %18 = arith.cmpi slt, %16, %17 : vector<8x128xi32>
    %cst_12 = arith.constant 0xFF800000 : f32
    %19 = vector.broadcast %cst_12 : f32 to vector<8x128xf32>
    %20 = arith.select %18, %15, %19 : vector<8x128xi1>, vector<8x128xf32>
    %cst_13 = arith.constant dense<0xFF800000> : vector<8xf32>
    %21 = vector.multi_reduction <maximumf>, %20, %cst_13 [1] : vector<8x128xf32> to vector<8xf32>
    %22 = vector.shape_cast %21 : vector<8xf32> to vector<8x1xf32>
    %23 = vector.broadcast %22 : vector<8x1xf32> to vector<8x128xf32>
    %24 = arith.subf %20, %23 : vector<8x128xf32>
    %25 = math.exp %24 : vector<8x128xf32>
    %cst_14 = arith.constant dense<0.000000e+00> : vector<8xf32>
    %26 = vector.multi_reduction <add>, %25, %cst_14 [1] : vector<8x128xf32> to vector<8xf32>
    %27 = vector.shape_cast %26 : vector<8xf32> to vector<8x1xf32>
    %28 = vector.broadcast %27 : vector<8x1xf32> to vector<8x128xf32>
    %29 = arith.divf %25, %28 : vector<8x128xf32>
    %30 = vector.extract_strided_slice %29 {offsets = [0, 0], sizes = [8, 16], strides = [1, 1]} : vector<8x128xf32> to vector<8x16xf32>
    %c0_15 = arith.constant 0 : index
    %c0_16 = arith.constant 0 : index
    %31 = vector.load %arg6[%c0_15, %c0_16] : memref<8x16xf32, #tpu.memory_space<vmem>>, vector<8x16xf32>
    tpu.vector_store %arg6[%c0_15, %c0_16], %30 {strides = array<i32>} : memref<8x16xf32, #tpu.memory_space<vmem>>, vector<8x16xf32>,
    return
  }
  func.func @transform_0(%arg0: i32) -> (i32, i32) {
    %c0_i32 = arith.constant 0 : i32
    %c0_i32_0 = arith.constant 0 : i32
    return %arg0, %c0_i32 : i32, i32
  }
  func.func @transform_1(%arg0: i32) -> (i32, i32) {
    %c0_i32 = arith.constant 0 : i32
    %c0_i32_0 = arith.constant 0 : i32
    %c0_i32_1 = arith.constant 0 : i32
    return %c0_i32, %c0_i32_0 : i32, i32
  }
  func.func @transform_2(%arg0: i32) -> (i32, i32) {
    %c0_i32 = arith.constant 0 : i32
    %c0_i32_0 = arith.constant 0 : i32
    %c0_i32_1 = arith.constant 0 : i32
    return %c0_i32, %c0_i32_0 : i32, i32
  }
  func.func @transform_3(%arg0: i32) -> (i32, i32) {
    %c0_i32 = arith.constant 0 : i32
    %c0_i32_0 = arith.constant 0 : i32
    %c0_i32_1 = arith.constant 0 : i32
    return %c0_i32, %c0_i32_0 : i32, i32
  }
  func.func @transform_4(%arg0: i32) -> (i32, i32) {
    %c0_i32 = arith.constant 0 : i32
    %c0_i32_0 = arith.constant 0 : i32
    %c0_i32_1 = arith.constant 0 : i32
    return %c0_i32, %c0_i32_0 : i32, i32
  }
  func.func @transform_5(%arg0: i32) -> (i32, i32) {
    %c0_i32 = arith.constant 0 : i32
    %c0_i32_0 = arith.constant 0 : i32
    return %arg0, %c0_i32 : i32, i32
  }
}

</mosaic_0001>

<llo_original>
// kernel: tpu_custom_call.1
$region0: #{tpu_custom_call.1}
  #allocation0 [shape = 'u32[]', space=smem, size = 0x4, offset = 0x4, fixed_abs, tag = 'smem constant byte address 0x4 - core index']
  #allocation1 [shape = 'u32[72,128]{1,0:T(1,128)}', space=vmem, size = 0x9000, scoped, tag = 'internal scratch']
  %s0 = inlined_call_operand.hbm [shape: bf16[8,64], index: 0, kind: input, shape index: {}]
  %s1 = inlined_call_operand.hbm [shape: bf16[64,128], index: 1, kind: input, shape index: {}]
  %s2 = inlined_call_operand.vmem [shape: f32[1,128], index: 2, kind: input, shape index: {}]
  %s3 = inlined_call_operand.hbm [shape: bf16[128,128], index: 3, kind: input, shape index: {}]
  %s4 = inlined_call_operand.vmem [shape: f32[1,128], index: 4, kind: input, shape index: {}]
  %s5 = inlined_call_operand.hbm [shape: f32[8,16], index: 5, kind: output, shape index: {}]
  %s6 = sld [smem:[#allocation0]]
  $region42: #{tpu_custom_call.1} parent=0
    _
  %s8 = ssub.s32 1, %s6
  %s9 = scalar_select 0, %s8, %s6
  $region1: #{tpu_custom_call.1} parent=0
    #allocation2 [shape = 'u8[2048]{0}', space=vmem, size = 0x800, scoped, tag = 'input window, operand 0, single buffered']
    #allocation3 [shape = 's32[1]{0}', space=sflag, size = 0x4, scoped, tag = 'scoped memory for tpu_custom_call.1']
    #allocation4 [shape = 's32[1]{0}', space=sflag, size = 0x4, scoped, tag = 'scoped memory for tpu_custom_call.1']
    #allocation5 [shape = 'u8[16384]{0}', space=vmem, size = 0x4000, scoped, tag = 'input window, operand 1, single buffered']
    #allocation6 [shape = 's32[1]{0}', space=sflag, size = 0x4, scoped, tag = 'scoped memory for tpu_custom_call.1']
    #allocation7 [shape = 'u8[32768]{0}', space=vmem, size = 0x8000, scoped, tag = 'input window, operand 3, single buffered']
    #allocation8 [shape = 'u8[4096]{0}', space=vmem, size = 0x1000, scoped, tag = 'output window, operand 0, single buffered']
    %10 = vsyncpa [#allocation3], 0
    %11 = vsyncpa [#allocation6], 0
    %12 = vsyncpa [#allocation4], 0
    // Predicated region
    $region2: #{tpu_custom_call.1} parent=1 // pred_check
      _
    $region3: #{tpu_custom_call.1} parent=1 // pred_check_branch
      %14 = sbr.rel (0) target = $region5
    $region4: #{tpu_custom_call.1} parent=1 // pred_region
      %16 = vsyncadd [#allocation3], 0
      %s18 = sshll.u32 %s0, 4
      %s19 = int_to_ptr.hbm [resolvable:$true] %s18
      %s20 = sshll.u32 [#allocation2], 4
      %s21 = int_to_ptr.vmem [resolvable:$true] %s20
      %23 = dma.hbm_to_vmem [thread:$0]  %s19, 64, %s21, [#allocation3]
    $region5: #{tpu_custom_call.1} parent=1 // pred_fallthru
      _
    // Predicated region
    $region6: #{tpu_custom_call.1} parent=1 // pred_check
      _
    $region7: #{tpu_custom_call.1} parent=1 // pred_check_branch
      %25 = sbr.rel (0) target = $region9
    $region8: #{tpu_custom_call.1} parent=1 // pred_region
      %27 = vsyncadd [#allocation6], 0
      %s28 = sshll.u32 %s1, 4
      %s29 = int_to_ptr.hbm [resolvable:$true] %s28
      %s30 = sshll.u32 [#allocation5], 4
      %s31 = int_to_ptr.vmem [resolvable:$true] %s30
      %36 = dma.hbm_to_vmem [thread:$0]  %s29, 512, %s31, [#allocation6], 64, 64, 4
    $region9: #{tpu_custom_call.1} parent=1 // pred_fallthru
      _
    // Predicated region
    $region10: #{tpu_custom_call.1} parent=1 // pred_check
      _
    $region11: #{tpu_custom_call.1} parent=1 // pred_check_branch
      %38 = sbr.rel (0) target = $region13
    $region12: #{tpu_custom_call.1} parent=1 // pred_region
      _
    $region13: #{tpu_custom_call.1} parent=1 // pred_fallthru
      _
    // Predicated region
    $region14: #{tpu_custom_call.1} parent=1 // pred_check
      _
    $region15: #{tpu_custom_call.1} parent=1 // pred_check_branch
      %40 = sbr.rel (0) target = $region17
    $region16: #{tpu_custom_call.1} parent=1 // pred_region
      %42 = vsyncadd [#allocation6], 0
      %s43 = sshll.u32 %s3, 4
      %s44 = int_to_ptr.hbm [resolvable:$true] %s43
      %s45 = sshll.u32 [#allocation7], 4
      %s46 = int_to_ptr.vmem [resolvable:$true] %s45
      %51 = dma.hbm_to_vmem [thread:$0]  %s44, 1024, %s46, [#allocation6], 64, 64, 4
    $region17: #{tpu_custom_call.1} parent=1 // pred_fallthru
      _
    // Predicated region
    $region18: #{tpu_custom_call.1} parent=1 // pred_check
      _
    $region19: #{tpu_custom_call.1} parent=1 // pred_check_branch
      %53 = sbr.rel (0) target = $region21
    $region20: #{tpu_custom_call.1} parent=1 // pred_region
      _
    $region21: #{tpu_custom_call.1} parent=1 // pred_fallthru
      _
    // Predicated region
    $region22: #{tpu_custom_call.1} parent=1 // pred_check
      _
    $region23: #{tpu_custom_call.1} parent=1 // pred_check_branch
      %55 = sbr.rel (0) target = $region25
    $region24: #{tpu_custom_call.1} parent=1 // pred_region
      %57 = dma.done [#allocation3], 64
    $region25: #{tpu_custom_call.1} parent=1 // pred_fallthru
      _
    // Predicated region
    $region26: #{tpu_custom_call.1} parent=1 // pred_check
      _
    $region27: #{tpu_custom_call.1} parent=1 // pred_check_branch
      %59 = sbr.rel (0) target = $region29
    $region28: #{tpu_custom_call.1} parent=1 // pred_region
      %61 = dma.done [#allocation6], 512
    $region29: #{tpu_custom_call.1} parent=1 // pred_fallthru
      _
    // Predicated region
    $region30: #{tpu_custom_call.1} parent=1 // pred_check
      _
    $region31: #{tpu_custom_call.1} parent=1 // pred_check_branch
      %63 = sbr.rel (0) target = $region33
    $region32: #{tpu_custom_call.1} parent=1 // pred_region
      %65 = dma.done [#allocation6], 1024
    $region33: #{tpu_custom_call.1} parent=1 // pred_fallthru
      _
    %v67 = vld [vmem:[#allocation2] sm:$0xf]
    %v68 = vld [vmem:[#allocation5] sm:$0xf]
    %v69 = vld [vmem:[#allocation5 + $0x4] sm:$0xf]
    %v70 = vld [vmem:[#allocation5 + $0x8] sm:$0xf]
    %v71 = vld [vmem:[#allocation5 + $0xc] sm:$0xf]
    %v72 = vld [vmem:[#allocation5 + $0x10] sm:$0xf]
    %v73 = vld [vmem:[#allocation5 + $0x14] sm:$0xf]
    %v74 = vld [vmem:[#allocation5 + $0x18] sm:$0xf]
    %v75 = vld [vmem:[#allocation5 + $0x1c] sm:$0xf]
    %v76 = vld [vmem:[%s2] sm:$0x1]
    %v78 = vperm.slane %v76, 0
    %v88 = vunpack.c.l.b16 %v68
    %v89 = vunpack.c.l.b16 %v69
    %v90 = vunpack.c.l.b16 %v70
    %v91 = vunpack.c.l.b16 %v71
    %v92 = vunpack.c.l.b16 %v72
    %v93 = vunpack.c.l.b16 %v73
    %v94 = vunpack.c.l.b16 %v74
    %v95 = vunpack.c.l.b16 %v75
    %v96 = vpack.c.b16 %v89, %v88
    %v97 = vpack.c.b16 %v91, %v90
    %v98 = vpack.c.b16 %v93, %v92
    %v99 = vpack.c.b16 %v95, %v94
    %vm104 = vcmask 523264
    %v106 = vsel %vm104, %v67, 0
    %108 = vmatpush.bf16.msra.mxu0 0
    %109 = vmatpush.bf16.msra.mxu0 0
    %110 = vmatpush.bf16.msra.mxu0 0
    %111 = vmatpush.bf16.msra.mxu0 0
    %112 = vmatpush.bf16.msra.mxu0 %v99
    %113 = vmatpush.bf16.msra.mxu0 %v98
    %114 = vmatpush.bf16.msra.mxu0 %v97
    %115 = vmatpush.bf16.msra.mxu0 %v96
    %116 = vmatmul.bf16.gmra.mxu0 %v106
    %v117 = vpop.f32.mrf.mxu0
    %v118 = vadd.f32 %v78, %v117
    %v119 = vpop.f32.mrf.mxu0
    %120 = vdwg.mxu0
    %v121 = vmax.f32 %v118, 0.0
    %v122 = vpack.c.bf16 %v121, %v121
    %v123 = vld [vmem:[#allocation7] sm:$0xf]
    %v124 = vld [vmem:[#allocation7 + $0x4] sm:$0xf]
    %v125 = vld [vmem:[#allocation7 + $0x8] sm:$0xf]
    %v126 = vld [vmem:[#allocation7 + $0xc] sm:$0xf]
    %v127 = vld [vmem:[#allocation7 + $0x10] sm:$0xf]
    %v128 = vld [vmem:[#allocation7 + $0x14] sm:$0xf]
    %v129 = vld [vmem:[#allocation7 + $0x18] sm:$0xf]
    %v130 = vld [vmem:[#allocation7 + $0x1c] sm:$0xf]
    %v131 = vld [vmem:[#allocation7 + $0x20] sm:$0xf]
    %v132 = vld [vmem:[#allocation7 + $0x24] sm:$0xf]
    %v133 = vld [vmem:[#allocation7 + $0x28] sm:$0xf]
    %v134 = vld [vmem:[#allocation7 + $0x2c] sm:$0xf]
    %v135 = vld [vmem:[#allocation7 + $0x30] sm:$0xf]
    %v136 = vld [vmem:[#allocation7 + $0x34] sm:$0xf]
    %v137 = vld [vmem:[#allocation7 + $0x38] sm:$0xf]
    %v138 = vld [vmem:[#allocation7 + $0x3c] sm:$0xf]
    %v139 = vld [vmem:[%s4] sm:$0x1]
    %v141 = vperm.slane %v139, 0
    %v159 = vunpack.c.l.b16 %v123
    %v160 = vunpack.c.l.b16 %v124
    %v161 = vunpack.c.l.b16 %v125
    %v162 = vunpack.c.l.b16 %v126
    %v163 = vunpack.c.l.b16 %v127
    %v164 = vunpack.c.l.b16 %v128
    %v165 = vunpack.c.l.b16 %v129
    %v166 = vunpack.c.l.b16 %v130
    %v167 = vunpack.c.l.b16 %v131
    %v168 = vunpack.c.l.b16 %v132
    %v169 = vunpack.c.l.b16 %v133
    %v170 = vunpack.c.l.b16 %v134
    %v171 = vunpack.c.l.b16 %v135
    %v172 = vunpack.c.l.b16 %v136
    %v173 = vunpack.c.l.b16 %v137
    %v174 = vunpack.c.l.b16 %v138
    %v175 = vpack.c.b16 %v160, %v159
    %v176 = vpack.c.b16 %v162, %v161
    %v177 = vpack.c.b16 %v164, %v163
    %v178 = vpack.c.b16 %v166, %v165
    %v179 = vpack.c.b16 %v168, %v167
    %v180 = vpack.c.b16 %v170, %v169
    %v181 = vpack.c.b16 %v172, %v171
    %v182 = vpack.c.b16 %v174, %v173
    %191 = vmatpush.bf16.msra.mxu0 %v182
    %192 = vmatpush.bf16.msra.mxu0 %v181
    %193 = vmatpush.bf16.msra.mxu0 %v180
    %194 = vmatpush.bf16.msra.mxu0 %v179
    %195 = vmatpush.bf16.msra.mxu0 %v178
    %196 = vmatpush.bf16.msra.mxu0 %v177
    %197 = vmatpush.bf16.msra.mxu0 %v176
    %198 = vmatpush.bf16.msra.mxu0 %v175
    %199 = vmatmul.bf16.gmra.mxu0 %v122
    %v200 = vpop.f32.mrf.mxu0
    %v201 = vadd.f32 %v141, %v200
    %v202 = vpop.f32.mrf.mxu0
    %203 = vdwg.mxu0
    %v204 = vmax.f32 %v201, 0.0
    %v205 = vlaneseq
    %v206 = vand.u32 %v205, 127
    %vm207 = vcmp.lt.s32.totalorder %v206, 16
    %v208 = vsel %vm207, %v204, -inf
    %209 = vmax.xlane.f32.xlu0 %v208
    %v210 = vpop.xlane.xlu0 %209
    %v211 = vsub.f32 %v208, %v210
    %v212 = vmul.f32 %v211, 1.442695
    %v213 = vpow.pop %v212
    %214 = vadd.xlane.f32.xlu0 %v213
    %v215 = vpop.xlane.xlu0 %214
    %v216 = vrcp.pop %v215
    %v217 = vmul.f32 %v215, %v216
    %v218 = vsub.f32 1.0, %v217
    %v219 = vmul.f32 %v216, %v218
    %v220 = vadd.f32 %v216, %v219
    %vm221 = vweird.f32 %v215
    %vm222 = vweird.f32 %v216
    %vm223 = vmor %vm221, %vm222
    %v224 = vsel %vm223, %v216, %v220
    %v225 = vand.u32 2147483647, %v215
    %vm226 = vcmp.eq.f32.partialorder %v225, 8.507059e+37
    %v227 = vand.u32 %v215, 2147483648
    %v228 = vor.u32 1.1754944e-38, %v227
    %v229 = vsel %vm226, %v228, %v224
    %v230 = vmul.f32 %v213, %v229
    %vm231 = vcmask 130048
    %232 = vst.msk [vmem:[#allocation8] sm:$0xff] %vm231, %v230
    // Predicated region
    $region34: #{tpu_custom_call.1} parent=1 // pred_check
      _
    $region35: #{tpu_custom_call.1} parent=1 // pred_check_branch
      %234 = sbr.rel (0) target = $region37
    $region36: #{tpu_custom_call.1} parent=1 // pred_region
      %236 = vsyncadd [#allocation4], 0
      %s238 = sshll.u32 [#allocation8], 4
      %s239 = int_to_ptr.vmem [resolvable:$true] %s238
      %s240 = sshll.u32 %s5, 4
      %s241 = int_to_ptr.hbm [resolvable:$true] %s240
      %243 = dma.vmem_to_hbm [thread:$0]  %s239, 128, %s241, [#allocation4]
    $region37: #{tpu_custom_call.1} parent=1 // pred_fallthru
      _
    // Predicated region
    $region38: #{tpu_custom_call.1} parent=1 // pred_check
      _
    $region39: #{tpu_custom_call.1} parent=1 // pred_check_branch
      %245 = sbr.rel (0) target = $region41
    $region40: #{tpu_custom_call.1} parent=1 // pred_region
      %247 = dma.done [#allocation4], 128
    $region41: #{tpu_custom_call.1} parent=1 // pred_fallthru
      _
    %248 = vsyncpa [#allocation3], 1
    %249 = vsyncpa [#allocation6], 1
    %250 = vsyncpa [#allocation4], 1

</llo_original>
